<compile_context>
chip_gen: v7x
topology: tpu7x:2x2x1
jax: 0.10.0
libtpu: 0.0.40
codegen_flags: <defaults>
</compile_context>

<pallas_src>
import jax
import jax.numpy as jnp
from jax.experimental import pallas as pl
from jax.experimental.pallas import tpu as pltpu


def _identity_kernel(x_ref, o_ref):
    # Pure copy: Identity.forward returns its input unchanged.
    o_ref[...] = x_ref[...]


def _choose_cols(total: int, last_dim: int) -> int:
    # Prefer a lane-dense view: largest power-of-two lane width that divides
    # the flattened size (full 128-lane stores, multiple sublanes populated).
    for c in (1024, 512, 256, 128):
        if total % c == 0:
            return c
    # Fallback: keep the original trailing dim (a full-extent block dim is
    # legal even when not a multiple of 128).
    if last_dim > 0 and total % last_dim == 0:
        return last_dim
    return total


def _identity_2d(x2: jax.Array) -> jax.Array:
    rows, cols = x2.shape
    itemsize = jnp.dtype(x2.dtype).itemsize

    # ~2 MiB per block: with double-buffered input + output (4 buffers) this
    # stays within the 16 MiB scoped-VMEM default on v5e and comfortably under
    # v6e/v7x limits, while amortizing the ~0.35 us/grid-step overhead.
    target_block_bytes = 2 * 1024 * 1024
    tile_r = min(rows, max(1, target_block_bytes // max(1, cols * itemsize)))
    # Sublane alignment: block row dim must be a multiple of 8 or the full
    # row extent.
    tile_r = (tile_r // 8) * 8
    if tile_r < 8 or tile_r >= rows:
        tile_r = rows

    grid = (pl.cdiv(rows, tile_r),)

    return pl.pallas_call(
        _identity_kernel,
        out_shape=jax.ShapeDtypeStruct((rows, cols), x2.dtype),
        grid_spec=pltpu.PrefetchScalarGridSpec(
            num_scalar_prefetch=0,
            grid=grid,
            in_specs=[pl.BlockSpec((tile_r, cols), lambda i: (i, 0))],
            out_specs=pl.BlockSpec((tile_r, cols), lambda i: (i, 0)),
        ),
        # Identity should move as few bytes as possible: alias input -> output
        # so XLA can reuse the input buffer when it is donatable.
        input_output_aliases={0: 0},
        # Advise the scheduler this custom call is pure memory traffic.
        cost_estimate=pl.CostEstimate(
            flops=0,
            transcendentals=0,
            bytes_accessed=2 * rows * cols * itemsize,
        ),
        compiler_params=pltpu.CompilerParams(
            dimension_semantics=("parallel",),  # grid axis shardable across TCs
        ),
    )(x2)


@jax.jit
def identity_pallas(x: jax.Array) -> jax.Array:
    """Identity forward pass (phlower Identity) as a Pallas copy kernel."""
    orig_shape = x.shape
    total = x.size
    if total == 0:
        return x  # nothing to copy

    last_dim = orig_shape[-1] if x.ndim >= 1 else 1
    cols = _choose_cols(total, last_dim)
    rows = total // cols

    x2 = x.reshape(rows, cols)
    out = _identity_2d(x2)
    return out.reshape(orig_shape)


if __name__ == "__main__":
    key = jax.random.PRNGKey(0)
    # Small NCHW-style input consistent with a generic feature tensor.
    x = jax.random.normal(key, (2, 4, 16, 16), dtype=jnp.float32)

    y = identity_pallas(x)
    jax.block_until_ready(y)

    assert y.shape == x.shape
    assert y.dtype == x.dtype
    assert bool(jnp.all(y == x))

    print("KERNEL_OK")
</pallas_src>

<mosaic_0001>
module attributes {stable_mosaic.version = 11 : i64} {
  func.func @_identity_kernel(%arg0: i32, %arg1: memref<2x1024xf32, #tpu.memory_space<vmem>>, %arg2: memref<2x1024xf32, #tpu.memory_space<vmem>>) attributes {dimension_semantics = [#tpu.dimension_semantics<parallel>], iteration_bounds = array<i64: 1>, scalar_prefetch = 0 : i64, scratch_operands = 0 : i64, tpu.core_type = #tpu.core_type<tc>, window_params = [{transform_indices = @transform_0, window_bounds = array<i64: 2, 1024>}, {transform_indices = @transform_1, window_bounds = array<i64: 2, 1024>}]} {
    %c0 = arith.constant 0 : index
    %c0_0 = arith.constant 0 : index
    %0 = vector.load %arg1[%c0, %c0_0] : memref<2x1024xf32, #tpu.memory_space<vmem>>, vector<2x1024xf32>
    %c0_1 = arith.constant 0 : index
    %c0_2 = arith.constant 0 : index
    %1 = vector.load %arg2[%c0_1, %c0_2] : memref<2x1024xf32, #tpu.memory_space<vmem>>, vector<2x1024xf32>
    tpu.vector_store %arg2[%c0_1, %c0_2], %0 {strides = array<i32>} : memref<2x1024xf32, #tpu.memory_space<vmem>>, vector<2x1024xf32>,
    return
  }
  func.func @transform_0(%arg0: i32) -> (i32, i32) {
    %c0_i32 = arith.constant 0 : i32
    %c0_i32_0 = arith.constant 0 : i32
    return %arg0, %c0_i32 : i32, i32
  }
  func.func @transform_1(%arg0: i32) -> (i32, i32) {
    %c0_i32 = arith.constant 0 : i32
    %c0_i32_0 = arith.constant 0 : i32
    return %arg0, %c0_i32 : i32, i32
  }
}

</mosaic_0001>

<llo_original>
// kernel: identity_pallas.1
$region0: #{identity_pallas.1}
  #allocation0 [shape = 'u32[]', space=smem, size = 0x4, offset = 0x4, fixed_abs, tag = 'smem constant byte address 0x4 - core index']
  #allocation1 [shape = 'u32[144,128]{1,0:T(1,128)}', space=vmem, size = 0x12000, scoped, tag = 'internal scratch']
  %s0 = inlined_call_operand.vmem [shape: f32[2,1024], index: 0, kind: input, shape index: {}, may-alias: {0,1}]
  %s1 = inlined_call_operand.vmem [shape: f32[2,1024], index: 1, kind: output, shape index: {}, may-alias: {0,1}]
  %s2 = sld [smem:[#allocation0]]
  $region14: #{identity_pallas.1} parent=0
    _
  %s4 = ssub.s32 1, %s2
  %s5 = scalar_select 0, %s4, %s2
  // Predicated region
  $region2: #{identity_pallas.1} parent=0 // pred_check
    _
  $region3: #{identity_pallas.1} parent=0 // pred_check_branch
    %7 = sbr.rel (0) target = $region5
  $region4: #{identity_pallas.1} parent=0 // pred_region
    _
  $region5: #{identity_pallas.1} parent=0 // pred_fallthru
    _
  %v8 = vld [vmem:[%s0] sm:$0xff]
  %v9 = vld [vmem:[%s0 + $0x8] sm:$0xff]
  %10 = vst [vmem:[%s1] sm:$0xff] %v8
  %11 = vst [vmem:[%s1 + $0x8] sm:$0xff] %v9
  // Predicated region
  $region6: #{identity_pallas.1} parent=0 // pred_check
    _
  $region7: #{identity_pallas.1} parent=0 // pred_check_branch
    %13 = sbr.rel (0) target = $region9
  $region8: #{identity_pallas.1} parent=0 // pred_region
    _
  $region9: #{identity_pallas.1} parent=0 // pred_fallthru
    _
  // Predicated region
  $region10: #{identity_pallas.1} parent=0 // pred_check
    _
  $region11: #{identity_pallas.1} parent=0 // pred_check_branch
    %15 = sbr.rel (0) target = $region13
  $region12: #{identity_pallas.1} parent=0 // pred_region
    _
  $region13: #{identity_pallas.1} parent=0 // pred_fallthru
    _

</llo_original>
